<compile_context>
chip_gen: v7x
topology: tpu7x:2x2x1
jax: 0.10.0
libtpu: 0.0.40
codegen_flags: <defaults>
</compile_context>

<pallas_src>
import jax
import jax.numpy as jnp
from jax import lax
from jax.experimental import pallas as pl
from jax.experimental.pallas import tpu as pltpu


# Contract the last dim of both operands: A(M,K) @ B(N,K)^T  ("NT" matmul).
_TRANS_B_DIMS = (((1,), (1,)), ((), ()))


def multiplier_kernel(obs_ref, w1_ref, b1_ref, w2_ref, b2_ref, w3_ref, b3_ref, o_ref):
    # obs_ref: (TILE_B, OBS_DIM)   w1: (H1, OBS_DIM)  b1: (H1, 1)
    # w2: (H2, H1)  b2: (H2, 1)    w3: (H2, 1)        b3: (1, 1)
    # o_ref: (1, TILE_B)

    # Hidden layer 1 (transposed orientation: batch on the lane axis).
    h1 = lax.dot_general(w1_ref[...], obs_ref[...], _TRANS_B_DIMS,
                         preferred_element_type=jnp.float32)            # (H1, TILE_B)
    h1 = jnp.maximum(h1 + b1_ref[...], 0.0)

    # Hidden layer 2.
    h2 = jnp.dot(w2_ref[...], h1, preferred_element_type=jnp.float32)   # (H2, TILE_B)
    h2 = jnp.maximum(h2 + b2_ref[...], 0.0)

    # Output layer (out_features == 1): VPU multiply + sublane reduce, skip the MXU.
    z = jnp.sum(h2 * w3_ref[...], axis=0, keepdims=True) + b3_ref[...]  # (1, TILE_B)

    # Numerically stable single-branch softplus, then clamp(max=10000).
    sp = jnp.maximum(z, 0.0) + jnp.log1p(jnp.exp(-jnp.abs(z)))
    o_ref[...] = jnp.minimum(sp, 10000.0)


def _pick_tile_b(batch, obs_dim, h1, h2, max_tile_b, vmem_budget_bytes):
    """Biggest lane-aligned batch tile that (a) fits the VMEM budget, (b) respects
    max_tile_b, and (c) leaves >= 2 grid steps when the batch spans >= 256 lanes
    (so v7x's second TensorCore gets work via the 'parallel' grid axis)."""
    b_lanes = pl.cdiv(batch, 128) * 128
    # Per-row f32 bytes: obs tile double-buffered + h1/h2 temporaries + output double-buffered.
    bytes_per_row = 4 * (2 * obs_dim + h1 + h2 + 2)
    vmem_cap = max(((vmem_budget_bytes // bytes_per_row) // 128) * 128, 128)
    tile = min(max_tile_b, vmem_cap, b_lanes)
    if b_lanes >= 256:
        half = pl.cdiv(b_lanes // 2, 128) * 128   # guarantees grid >= 2
        tile = min(tile, half)
    return max(tile, 128)


def multiplier_forward(obs, params, *, max_tile_b=16384, vmem_budget_bytes=12 << 20):
    """obs: (B, obs_dim) f32; params in PyTorch layout (W: (out, in), b: (out,)).

    Returns (B,) f32 = squeeze(clamp(softplus(mlp(obs)), max=10000), -1).
    """
    w1, b1, w2, b2, w3, b3 = params
    B, obs_dim = obs.shape
    h1_dim, h2_dim = w1.shape[0], w2.shape[0]

    tile_b = _pick_tile_b(B, obs_dim, h1_dim, h2_dim, max_tile_b, vmem_budget_bytes)
    grid_b = pl.cdiv(B, tile_b)
    b_pad = grid_b * tile_b   # output is padded; obs is NOT padded (ragged last block)

    # Small params reshaped for the kernel's feature-major orientation.
    b1c = b1.reshape(-1, 1).astype(jnp.float32)
    b2c = b2.reshape(-1, 1).astype(jnp.float32)
    w3c = w3.reshape(-1, 1).astype(jnp.float32)   # (H2, 1)
    b3c = b3.reshape(1, 1).astype(jnp.float32)

    const = lambda i: (0, 0)
    out = pl.pallas_call(
        multiplier_kernel,
        out_shape=jax.ShapeDtypeStruct((1, b_pad), jnp.float32),
        grid=(grid_b,),
        in_specs=[
            # Ragged last block: Pallas clamps the edge DMA; garbage rows only feed
            # output lanes >= B, which are sliced off below. Never reduce over them.
            pl.BlockSpec((tile_b, obs_dim), lambda i: (i, 0)),
            pl.BlockSpec(w1.shape, const),
            pl.BlockSpec(b1c.shape, const),
            pl.BlockSpec(w2.shape, const),
            pl.BlockSpec(b2c.shape, const),
            pl.BlockSpec(w3c.shape, const),
            pl.BlockSpec(b3c.shape, const),
        ],
        out_specs=pl.BlockSpec((1, tile_b), lambda i: (0, i)),
        compiler_params=pltpu.CompilerParams(
            dimension_semantics=("parallel",),
            # Big tiles overshoot v5e's 16 MiB scoped default; 40 MiB is safe on every
            # generation (v7x physical VMEM is 64 MiB) and leaves double-buffer headroom.
            vmem_limit_bytes=40 << 20,
        ),
    )(obs.astype(jnp.float32), w1.astype(jnp.float32), b1c,
      w2.astype(jnp.float32), b2c, w3c, b3c)

    # torch.squeeze(..., -1) + drop batch padding.
    return out[0, :B]


def multiplier_ref(obs, params):
    """Pure-JAX reference with identical semantics to the PyTorch module."""
    w1, b1, w2, b2, w3, b3 = params
    h1 = jnp.maximum(obs @ w1.T + b1, 0.0)
    h2 = jnp.maximum(h1 @ w2.T + b2, 0.0)
    z = h2 @ w3.T + b3
    return jnp.squeeze(jnp.minimum(jax.nn.softplus(z), 10000.0), -1)


def init_params(key, obs_dim, hidden_sizes):
    """PyTorch-layout init (W: (out, in), b: (out,)), uniform(+-1/sqrt(fan_in))."""
    sizes = [obs_dim] + list(hidden_sizes) + [1]
    params = []
    for j in range(len(sizes) - 1):
        fan_in, fan_out = sizes[j], sizes[j + 1]
        key, kw, kb = jax.random.split(key, 3)
        bound = 1.0 / jnp.sqrt(float(fan_in))
        w = jax.random.uniform(kw, (fan_out, fan_in), jnp.float32, -bound, bound)
        b = jax.random.uniform(kb, (fan_out,), jnp.float32, -bound, bound)
        params += [w, b]
    return params


if __name__ == "__main__":
    OBS_DIM = 16
    HIDDEN_SIZES = (32, 32)

    key = jax.random.PRNGKey(0)
    k_obs, k_obs2, k_params = jax.random.split(key, 3)
    params = init_params(k_params, OBS_DIM, HIDDEN_SIZES)

    # Case 1: batch=200 (not a multiple of 128) -> 2 grid steps, ragged last obs block.
    obs = jax.random.normal(k_obs, (200, OBS_DIM), dtype=jnp.float32)
    result = multiplier_forward(obs, params)
    jax.block_until_ready(result)
    expected = multiplier_ref(obs, params)
    assert result.shape == (200,)
    assert bool(jnp.all(result >= 0.0)) and bool(jnp.all(result <= 10000.0))
    assert bool(jnp.allclose(result, expected, rtol=1e-4, atol=1e-4)), float(
        jnp.max(jnp.abs(result - expected)))

    # Case 2: batch=1000 -> bigger tiles, still >= 2 grid steps, ragged edge again.
    obs2 = jax.random.normal(k_obs2, (1000, OBS_DIM), dtype=jnp.float32)
    result2 = multiplier_forward(obs2, params)
    jax.block_until_ready(result2)
    expected2 = multiplier_ref(obs2, params)
    assert result2.shape == (1000,)
    assert bool(jnp.allclose(result2, expected2, rtol=1e-4, atol=1e-4)), float(
        jnp.max(jnp.abs(result2 - expected2)))

    print("KERNEL_OK")
</pallas_src>

<mosaic_0001>
module attributes {stable_mosaic.version = 11 : i64} {
  func.func @multiplier_kernel(%arg0: i32, %arg1: memref<128x16xf32, #tpu.memory_space<vmem>>, %arg2: memref<32x16xf32, #tpu.memory_space<vmem>>, %arg3: memref<32x1xf32, #tpu.memory_space<vmem>>, %arg4: memref<32x32xf32, #tpu.memory_space<vmem>>, %arg5: memref<32x1xf32, #tpu.memory_space<vmem>>, %arg6: memref<32x1xf32, #tpu.memory_space<vmem>>, %arg7: memref<1x1xf32, #tpu.memory_space<vmem>>, %arg8: memref<1x128xf32, #tpu.memory_space<vmem>>) attributes {dimension_semantics = [#tpu.dimension_semantics<parallel>], iteration_bounds = array<i64: 2>, scalar_prefetch = 0 : i64, scratch_operands = 0 : i64, tpu.core_type = #tpu.core_type<tc>, window_params = [{transform_indices = @transform_0, window_bounds = array<i64: 128, 16>}, {pipeline_mode = #tpu.pipeline_mode<synchronous>, transform_indices = @transform_1, window_bounds = array<i64: 32, 16>}, {pipeline_mode = #tpu.pipeline_mode<synchronous>, transform_indices = @transform_2, window_bounds = array<i64: 32, 1>}, {pipeline_mode = #tpu.pipeline_mode<synchronous>, transform_indices = @transform_3, window_bounds = array<i64: 32, 32>}, {pipeline_mode = #tpu.pipeline_mode<synchronous>, transform_indices = @transform_4, window_bounds = array<i64: 32, 1>}, {pipeline_mode = #tpu.pipeline_mode<synchronous>, transform_indices = @transform_5, window_bounds = array<i64: 32, 1>}, {pipeline_mode = #tpu.pipeline_mode<synchronous>, transform_indices = @transform_6, window_bounds = array<i64: 1, 1>}, {transform_indices = @transform_7, window_bounds = array<i64: 1, 128>}]} {
    %c0 = arith.constant 0 : index
    %c0_0 = arith.constant 0 : index
    %0 = vector.load %arg2[%c0, %c0_0] : memref<32x16xf32, #tpu.memory_space<vmem>>, vector<32x16xf32>
    %c0_1 = arith.constant 0 : index
    %c0_2 = arith.constant 0 : index
    %1 = vector.load %arg1[%c0_1, %c0_2] : memref<128x16xf32, #tpu.memory_space<vmem>>, vector<128x16xf32>
    %cst = arith.constant dense<0.000000e+00> : vector<32x128xf32>
    %2 = tpu.matmul %0, %1, %cst {dimension_numbers = #tpu.dot_dimension_numbers<[1], [1], [0], [0], [0, 0, 1, 0], [], []>} : vector<32x16xf32>, vector<128x16xf32>, vector<32x128xf32> -> vector<32x128xf32>
    %c0_3 = arith.constant 0 : index
    %c0_4 = arith.constant 0 : index
    %3 = vector.load %arg3[%c0_3, %c0_4] : memref<32x1xf32, #tpu.memory_space<vmem>>, vector<32x1xf32>
    %4 = vector.broadcast %3 : vector<32x1xf32> to vector<32x128xf32>
    %5 = arith.addf %2, %4 : vector<32x128xf32>
    %cst_5 = arith.constant 0.000000e+00 : f32
    %6 = vector.broadcast %cst_5 : f32 to vector<32x128xf32>
    %7 = arith.maximumf %5, %6 : vector<32x128xf32>
    %c0_6 = arith.constant 0 : index
    %c0_7 = arith.constant 0 : index
    %8 = vector.load %arg4[%c0_6, %c0_7] : memref<32x32xf32, #tpu.memory_space<vmem>>, vector<32x32xf32>
    %cst_8 = arith.constant dense<0.000000e+00> : vector<32x128xf32>
    %9 = tpu.matmul %8, %7, %cst_8 {dimension_numbers = #tpu.dot_dimension_numbers<[1], [0], [0], [1], [0, 0, 1, 1], [], []>} : vector<32x32xf32>, vector<32x128xf32>, vector<32x128xf32> -> vector<32x128xf32>
    %c0_9 = arith.constant 0 : index
    %c0_10 = arith.constant 0 : index
    %10 = vector.load %arg5[%c0_9, %c0_10] : memref<32x1xf32, #tpu.memory_space<vmem>>, vector<32x1xf32>
    %11 = vector.broadcast %10 : vector<32x1xf32> to vector<32x128xf32>
    %12 = arith.addf %9, %11 : vector<32x128xf32>
    %cst_11 = arith.constant 0.000000e+00 : f32
    %13 = vector.broadcast %cst_11 : f32 to vector<32x128xf32>
    %14 = arith.maximumf %12, %13 : vector<32x128xf32>
    %c0_12 = arith.constant 0 : index
    %c0_13 = arith.constant 0 : index
    %15 = vector.load %arg6[%c0_12, %c0_13] : memref<32x1xf32, #tpu.memory_space<vmem>>, vector<32x1xf32>
    %16 = vector.broadcast %15 : vector<32x1xf32> to vector<32x128xf32>
    %17 = arith.mulf %14, %16 : vector<32x128xf32>
    %cst_14 = arith.constant dense<0.000000e+00> : vector<128xf32>
    %18 = vector.multi_reduction <add>, %17, %cst_14 [0] : vector<32x128xf32> to vector<128xf32>
    %19 = vector.shape_cast %18 : vector<128xf32> to vector<1x128xf32>
    %c0_15 = arith.constant 0 : index
    %c0_16 = arith.constant 0 : index
    %20 = vector.load %arg7[%c0_15, %c0_16] : memref<1x1xf32, #tpu.memory_space<vmem>>, vector<1x1xf32>
    %21 = vector.broadcast %20 : vector<1x1xf32> to vector<1x128xf32>
    %22 = arith.addf %19, %21 : vector<1x128xf32>
    %cst_17 = arith.constant 0.000000e+00 : f32
    %23 = vector.broadcast %cst_17 : f32 to vector<1x128xf32>
    %24 = arith.maximumf %22, %23 : vector<1x128xf32>
    %25 = math.absf %22 : vector<1x128xf32>
    %cst_18 = arith.constant 0.000000e+00 : f32
    %26 = vector.broadcast %cst_18 : f32 to vector<1x128xf32>
    %27 = arith.subf %26, %25 : vector<1x128xf32>
    %28 = math.exp %27 : vector<1x128xf32>
    %29 = math.log1p %28 : vector<1x128xf32>
    %30 = arith.addf %24, %29 : vector<1x128xf32>
    %cst_19 = arith.constant 1.000000e+04 : f32
    %31 = vector.broadcast %cst_19 : f32 to vector<1x128xf32>
    %32 = arith.minimumf %30, %31 : vector<1x128xf32>
    %c0_20 = arith.constant 0 : index
    %c0_21 = arith.constant 0 : index
    %33 = vector.load %arg8[%c0_20, %c0_21] : memref<1x128xf32, #tpu.memory_space<vmem>>, vector<1x128xf32>
    tpu.vector_store %arg8[%c0_20, %c0_21], %32 {strides = array<i32>} : memref<1x128xf32, #tpu.memory_space<vmem>>, vector<1x128xf32>,
    return
  }
  func.func @transform_0(%arg0: i32) -> (i32, i32) {
    %c0_i32 = arith.constant 0 : i32
    %c0_i32_0 = arith.constant 0 : i32
    return %arg0, %c0_i32 : i32, i32
  }
  func.func @transform_1(%arg0: i32) -> (i32, i32) {
    %c0_i32 = arith.constant 0 : i32
    %c0_i32_0 = arith.constant 0 : i32
    %c0_i32_1 = arith.constant 0 : i32
    return %c0_i32, %c0_i32_0 : i32, i32
  }
  func.func @transform_2(%arg0: i32) -> (i32, i32) {
    %c0_i32 = arith.constant 0 : i32
    %c0_i32_0 = arith.constant 0 : i32
    %c0_i32_1 = arith.constant 0 : i32
    return %c0_i32, %c0_i32_0 : i32, i32
  }
  func.func @transform_3(%arg0: i32) -> (i32, i32) {
    %c0_i32 = arith.constant 0 : i32
    %c0_i32_0 = arith.constant 0 : i32
    %c0_i32_1 = arith.constant 0 : i32
    return %c0_i32, %c0_i32_0 : i32, i32
  }
  func.func @transform_4(%arg0: i32) -> (i32, i32) {
    %c0_i32 = arith.constant 0 : i32
    %c0_i32_0 = arith.constant 0 : i32
    %c0_i32_1 = arith.constant 0 : i32
    return %c0_i32, %c0_i32_0 : i32, i32
  }
  func.func @transform_5(%arg0: i32) -> (i32, i32) {
    %c0_i32 = arith.constant 0 : i32
    %c0_i32_0 = arith.constant 0 : i32
    %c0_i32_1 = arith.constant 0 : i32
    return %c0_i32, %c0_i32_0 : i32, i32
  }
  func.func @transform_6(%arg0: i32) -> (i32, i32) {
    %c0_i32 = arith.constant 0 : i32
    %c0_i32_0 = arith.constant 0 : i32
    %c0_i32_1 = arith.constant 0 : i32
    return %c0_i32, %c0_i32_0 : i32, i32
  }
  func.func @transform_7(%arg0: i32) -> (i32, i32) {
    %c0_i32 = arith.constant 0 : i32
    %c0_i32_0 = arith.constant 0 : i32
    return %c0_i32, %arg0 : i32, i32
  }
}

</mosaic_0001>

<llo_original>
// kernel: tpu_custom_call.1
$region0: #{tpu_custom_call.1}
  #allocation0 [shape = 'u32[]', space=smem, size = 0x4, offset = 0x4, fixed_abs, tag = 'smem constant byte address 0x4 - core index']
  #allocation1 [shape = 'u32[144,128]{1,0:T(1,128)}', space=vmem, size = 0x12000, scoped, tag = 'internal scratch']
  #allocation2 [shape = 'f32[1,1]{1,0:T(1,128)S(1)}', space=vmem, size = 0x200, scoped, tag = 'scoped memory for tpu_custom_call.1']
  %s0 = inlined_call_operand.vmem [shape: f32[200,16], index: 0, kind: input, shape index: {}]
  %s1 = inlined_call_operand.vmem [shape: f32[32,16], index: 1, kind: input, shape index: {}]
  %s2 = inlined_call_operand.vmem [shape: f32[32,1], index: 2, kind: input, shape index: {}]
  %s3 = inlined_call_operand.vmem [shape: f32[32,32], index: 3, kind: input, shape index: {}]
  %s4 = inlined_call_operand.vmem [shape: f32[32,1], index: 4, kind: input, shape index: {}]
  %s5 = inlined_call_operand.vmem [shape: f32[32,1], index: 5, kind: input, shape index: {}]
  %s6 = inlined_call_operand.<no memory space> [shape: f32[1,1], index: 6, kind: input, shape index: {}]
  %s7 = inlined_call_operand.hbm [shape: f32[1,256], index: 7, kind: output, shape index: {}]
  %s8 = sld [smem:[#allocation0]]
  $region61: #{tpu_custom_call.1} parent=0
    _
  %s10 = ssub.s32 1, %s8
  %s11 = scalar_select 0, %s10, %s8
  %v12 = vstv %s6
  %13 = vst [vmem:[#allocation2] sm:$0x1] %v12
  $region1: #{tpu_custom_call.1} parent=0
    #allocation3 [shape = 'u8[1024]{0}', space=vmem, size = 0x400, scoped, tag = 'output window, operand 0']
    #allocation4 [shape = 's32[2]{0}', space=sflag, size = 0x8, scoped, tag = 'scoped memory for tpu_custom_call.1']
    %14 = vsyncpa [#allocation4], 0
    %s15 = scalar_lea.sflag [#allocation4], 1
    %16 = vsyncpa %s15, 0
    loop: start=0, step=1, limit=4
    $region2: #{tpu_custom_call.1} parent=1 // loop_pre_header
      _
    $region3: #{tpu_custom_call.1} parent=1 // loop_header
      %s18 = sphi 0, %s22
      %p19 = scmp.ge.s32.totalorder %s18, 4
      %s28 = sphi 0, %s30
      %s31 = sphi 0, %s28
      %s32 = sphi 0, %s31
      %s48 = sphi 0, %s32
      %s52 = sphi 0, %s52
      %s54 = sphi 0, %s52
      %s55 = sphi 0, %s54
      %s69 = sphi 0, %s55
      %s73 = sphi 0, %s73
      %s75 = sphi 0, %s73
      %s76 = sphi 0, %s75
      %s90 = sphi 0, %s76
      %s94 = sphi 0, %s94
      %s96 = sphi 0, %s94
      %s97 = sphi 0, %s96
      %s111 = sphi 0, %s97
      %s115 = sphi 0, %s115
      %s117 = sphi 0, %s115
      %s118 = sphi 0, %s117
      %s132 = sphi 0, %s118
      %s136 = sphi 0, %s136
      %s138 = sphi 0, %s136
      %s139 = sphi 0, %s138
      %s153 = sphi 0, %s139
      %s157 = sphi 0, %s157
      %s159 = sphi 0, %s157
      %s160 = sphi 0, %s159
      %s174 = sphi 0, %s160
      %s180 = sphi 0, %s182
      %s183 = sphi 0, %s180
      %s184 = sphi 0, %s183
      %s200 = sphi 0, %s184
    $region4: #{tpu_custom_call.1} parent=1 // loop_header_branch
      %21 = sbr.rel (%p19) target = $region8
    $region5: #{tpu_custom_call.1} parent=1 // loop_body
      %s23 = ssub.s32 %s18, 1
      %s24 = ssub.s32 %s18, 2
      %s25 = sadd.s32 %s18, 1
      %s26 = ssub.s32 %s18, %s25
      %p27 = scmp.eq.s32.totalorder %s26, 0
      %s29 = sadd.s32 %s28, 1
      %s30 = scalar_select %p27, %s28, %s29
      %p33 = pneg %p27
      %p34 = scmp.eq.s32.totalorder %s18, 1
      %p35 = por %p33, %p34
      %p36 = scmp.ne.s32.totalorder %s28, %s31
      %p37 = scmp.eq.s32.totalorder %s18, 0
      %p38 = por %p36, %p37
      %p39 = scmp.ne.s32.totalorder %s28, %s31
      %p40 = scmp.eq.s32.totalorder %s23, 1
      %p41 = por %p39, %p40
      %p42 = scmp.ne.s32.totalorder %s31, %s32
      %p43 = scmp.eq.s32.totalorder %s23, 0
      %p44 = por %p42, %p43
      %p45 = scmp.ne.s32.totalorder %s31, %s32
      %p46 = scmp.eq.s32.totalorder %s24, 1
      %p47 = por %p45, %p46
      %p49 = scmp.ne.s32.totalorder %s32, %s48
      %p50 = scmp.eq.s32.totalorder %s24, 0
      %p51 = por %p49, %p50
      %s53 = sadd.s32 %s52, 1
      %p56 = scmp.eq.s32.totalorder %s18, 1
      %p57 = scmp.ne.s32.totalorder %s52, %s54
      %p58 = scmp.eq.s32.totalorder %s18, 0
      %p59 = por %p57, %p58
      %p60 = scmp.ne.s32.totalorder %s52, %s54
      %p61 = scmp.eq.s32.totalorder %s23, 1
      %p62 = por %p60, %p61
      %p63 = scmp.ne.s32.totalorder %s54, %s55
      %p64 = scmp.eq.s32.totalorder %s23, 0
      %p65 = por %p63, %p64
      %p66 = scmp.ne.s32.totalorder %s54, %s55
      %p67 = scmp.eq.s32.totalorder %s24, 1
      %p68 = por %p66, %p67
      %p70 = scmp.ne.s32.totalorder %s55, %s69
      %p71 = scmp.eq.s32.totalorder %s24, 0
      %p72 = por %p70, %p71
      %s74 = sadd.s32 %s73, 1
      %p77 = scmp.eq.s32.totalorder %s18, 1
      %p78 = scmp.ne.s32.totalorder %s73, %s75
      %p79 = scmp.eq.s32.totalorder %s18, 0
      %p80 = por %p78, %p79
      %p81 = scmp.ne.s32.totalorder %s73, %s75
      %p82 = scmp.eq.s32.totalorder %s23, 1
      %p83 = por %p81, %p82
      %p84 = scmp.ne.s32.totalorder %s75, %s76
      %p85 = scmp.eq.s32.totalorder %s23, 0
      %p86 = por %p84, %p85
      %p87 = scmp.ne.s32.totalorder %s75, %s76
      %p88 = scmp.eq.s32.totalorder %s24, 1
      %p89 = por %p87, %p88
      %p91 = scmp.ne.s32.totalorder %s76, %s90
      %p92 = scmp.eq.s32.totalorder %s24, 0
      %p93 = por %p91, %p92
      %s95 = sadd.s32 %s94, 1
      %p98 = scmp.eq.s32.totalorder %s18, 1
      %p99 = scmp.ne.s32.totalorder %s94, %s96
      %p100 = scmp.eq.s32.totalorder %s18, 0
      %p101 = por %p99, %p100
      %p102 = scmp.ne.s32.totalorder %s94, %s96
      %p103 = scmp.eq.s32.totalorder %s23, 1
      %p104 = por %p102, %p103
      %p105 = scmp.ne.s32.totalorder %s96, %s97
      %p106 = scmp.eq.s32.totalorder %s23, 0
      %p107 = por %p105, %p106
      %p108 = scmp.ne.s32.totalorder %s96, %s97
      %p109 = scmp.eq.s32.totalorder %s24, 1
      %p110 = por %p108, %p109
      %p112 = scmp.ne.s32.totalorder %s97, %s111
      %p113 = scmp.eq.s32.totalorder %s24, 0
      %p114 = por %p112, %p113
      %s116 = sadd.s32 %s115, 1
      %p119 = scmp.eq.s32.totalorder %s18, 1
      %p120 = scmp.ne.s32.totalorder %s115, %s117
      %p121 = scmp.eq.s32.totalorder %s18, 0
      %p122 = por %p120, %p121
      %p123 = scmp.ne.s32.totalorder %s115, %s117
      %p124 = scmp.eq.s32.totalorder %s23, 1
      %p125 = por %p123, %p124
      %p126 = scmp.ne.s32.totalorder %s117, %s118
      %p127 = scmp.eq.s32.totalorder %s23, 0
      %p128 = por %p126, %p127
      %p129 = scmp.ne.s32.totalorder %s117, %s118
      %p130 = scmp.eq.s32.totalorder %s24, 1
      %p131 = por %p129, %p130
      %p133 = scmp.ne.s32.totalorder %s118, %s132
      %p134 = scmp.eq.s32.totalorder %s24, 0
      %p135 = por %p133, %p134
      %s137 = sadd.s32 %s136, 1
      %p140 = scmp.eq.s32.totalorder %s18, 1
      %p141 = scmp.ne.s32.totalorder %s136, %s138
      %p142 = scmp.eq.s32.totalorder %s18, 0
      %p143 = por %p141, %p142
      %p144 = scmp.ne.s32.totalorder %s136, %s138
      %p145 = scmp.eq.s32.totalorder %s23, 1
      %p146 = por %p144, %p145
      %p147 = scmp.ne.s32.totalorder %s138, %s139
      %p148 = scmp.eq.s32.totalorder %s23, 0
      %p149 = por %p147, %p148
      %p150 = scmp.ne.s32.totalorder %s138, %s139
      %p151 = scmp.eq.s32.totalorder %s24, 1
      %p152 = por %p150, %p151
      %p154 = scmp.ne.s32.totalorder %s139, %s153
      %p155 = scmp.eq.s32.totalorder %s24, 0
      %p156 = por %p154, %p155
      %s158 = sadd.s32 %s157, 1
      %p161 = scmp.eq.s32.totalorder %s18, 1
      %p162 = scmp.ne.s32.totalorder %s157, %s159
      %p163 = scmp.eq.s32.totalorder %s18, 0
      %p164 = por %p162, %p163
      %p165 = scmp.ne.s32.totalorder %s157, %s159
      %p166 = scmp.eq.s32.totalorder %s23, 1
      %p167 = por %p165, %p166
      %p168 = scmp.ne.s32.totalorder %s159, %s160
      %p169 = scmp.eq.s32.totalorder %s23, 0
      %p170 = por %p168, %p169
      %p171 = scmp.ne.s32.totalorder %s159, %s160
      %p172 = scmp.eq.s32.totalorder %s24, 1
      %p173 = por %p171, %p172
      %p175 = scmp.ne.s32.totalorder %s160, %s174
      %p176 = scmp.eq.s32.totalorder %s24, 0
      %p177 = por %p175, %p176
      %s178 = ssub.s32 %s18, %s25
      %p179 = scmp.eq.s32.totalorder %s178, 0
      %s181 = sadd.s32 %s180, 1
      %s182 = scalar_select %p179, %s180, %s181
      %p185 = pneg %p179
      %p186 = scmp.eq.s32.totalorder %s18, 1
      %p187 = por %p185, %p186
      %p188 = scmp.ne.s32.totalorder %s180, %s183
      %p189 = scmp.eq.s32.totalorder %s18, 0
      %p190 = por %p188, %p189
      %p191 = scmp.ne.s32.totalorder %s180, %s183
      %p192 = scmp.eq.s32.totalorder %s23, 1
      %p193 = por %p191, %p192
      %p194 = scmp.ne.s32.totalorder %s183, %s184
      %p195 = scmp.eq.s32.totalorder %s23, 0
      %p196 = por %p194, %p195
      %p197 = scmp.ne.s32.totalorder %s183, %s184
      %p198 = scmp.eq.s32.totalorder %s24, 1
      %p199 = por %p197, %p198
      %p201 = scmp.ne.s32.totalorder %s184, %s200
      %p202 = scmp.eq.s32.totalorder %s24, 0
      %p203 = por %p201, %p202
      %p204 = scmp.le.s32.totalorder 1, %s18
      %p205 = scmp.lt.s32.totalorder %s18, 3
      %p206 = pnand %p204, %p205
      %p207 = pneg %p206
      // Predicated region
      $region9: #{tpu_custom_call.1} parent=5 // pred_check
        _
      $region10: #{tpu_custom_call.1} parent=5 // pred_check_branch
        %209 = sbr.rel (%p206) target = $region12
      $region11: #{tpu_custom_call.1} parent=5 // pred_region
        %s210 = ssub.s32 %s18, 1
        // Predicated region
        $region13: #{tpu_custom_call.1} parent=11 // pred_check
          %p211 = pneg %p65
        $region14: #{tpu_custom_call.1} parent=11 // pred_check_branch
          %213 = sbr.rel (%p211) target = $region16
        $region15: #{tpu_custom_call.1} parent=11 // pred_region
          _
        $region16: #{tpu_custom_call.1} parent=11 // pred_fallthru
          _
        // Predicated region
        $region17: #{tpu_custom_call.1} parent=11 // pred_check
          %p214 = pneg %p86
        $region18: #{tpu_custom_call.1} parent=11 // pred_check_branch
          %216 = sbr.rel (%p214) target = $region20
        $region19: #{tpu_custom_call.1} parent=11 // pred_region
          _
        $region20: #{tpu_custom_call.1} parent=11 // pred_fallthru
          _
        // Predicated region
        $region21: #{tpu_custom_call.1} parent=11 // pred_check
          %p217 = pneg %p107
        $region22: #{tpu_custom_call.1} parent=11 // pred_check_branch
          %219 = sbr.rel (%p217) target = $region24
        $region23: #{tpu_custom_call.1} parent=11 // pred_region
          _
        $region24: #{tpu_custom_call.1} parent=11 // pred_fallthru
          _
        // Predicated region
        $region25: #{tpu_custom_call.1} parent=11 // pred_check
          %p220 = pneg %p128
        $region26: #{tpu_custom_call.1} parent=11 // pred_check_branch
          %222 = sbr.rel (%p220) target = $region28
        $region27: #{tpu_custom_call.1} parent=11 // pred_region
          _
        $region28: #{tpu_custom_call.1} parent=11 // pred_fallthru
          _
        // Predicated region
        $region29: #{tpu_custom_call.1} parent=11 // pred_check
          %p223 = pneg %p149
        $region30: #{tpu_custom_call.1} parent=11 // pred_check_branch
          %225 = sbr.rel (%p223) target = $region32
        $region31: #{tpu_custom_call.1} parent=11 // pred_region
          _
        $region32: #{tpu_custom_call.1} parent=11 // pred_fallthru
          _
        // Predicated region
        $region33: #{tpu_custom_call.1} parent=11 // pred_check
          %p226 = pneg %p170
        $region34: #{tpu_custom_call.1} parent=11 // pred_check_branch
          %228 = sbr.rel (%p226) target = $region36
        $region35: #{tpu_custom_call.1} parent=11 // pred_region
          _
        $region36: #{tpu_custom_call.1} parent=11 // pred_fallthru
          _
      $region12: #{tpu_custom_call.1} parent=5 // pred_fallthru
        _
      %p229 = scmp.lt.s32.totalorder %s18, 2
      // Predicated region
      $region37: #{tpu_custom_call.1} parent=5 // pred_check
        %p230 = pneg %p229
      $region38: #{tpu_custom_call.1} parent=5 // pred_check_branch
        %232 = sbr.rel (%p230) target = $region40
      $region39: #{tpu_custom_call.1} parent=5 // pred_region
        // Predicated region
        $region41: #{tpu_custom_call.1} parent=39 // pred_check
          %p233 = pneg %p38
        $region42: #{tpu_custom_call.1} parent=39 // pred_check_branch
          %235 = sbr.rel (%p233) target = $region44
        $region43: #{tpu_custom_call.1} parent=39 // pred_region
          %s236 = smul.u32 16, %s18
          %s237 = ssub.s32 25, %s236
          %p238 = scmp.lt.s32.totalorder %s237, 16
          %s239 = scalar_select %p238, %s237, 16
          %s240 = smul.u32 128, %s239
          %p241 = scmp.lt.s32.totalorder %s236, 24
          %s242 = scalar_select %p241, %s236, 24
          %s243 = smul.addr %s242, 8
          %s244 = scalar_lea.vmem %s0, %s243
          %s245 = smul.u32 16, %s18
          %s246 = ssub.s32 25, %s245
          %p247 = scmp.lt.s32.totalorder %s246, 16
          %s248 = scalar_select %p247, %s246, 16
          %s249 = smul.u32 128, %s248
        $region44: #{tpu_custom_call.1} parent=39 // pred_fallthru
          _
      $region40: #{tpu_custom_call.1} parent=5 // pred_fallthru
        _
      %p250 = scmp.le.s32.totalorder 1, %s18
      %p251 = scmp.lt.s32.totalorder %s18, 3
      %p252 = pnand %p250, %p251
      %p253 = pneg %p252
      // Predicated region
      $region45: #{tpu_custom_call.1} parent=5 // pred_check
        _
      $region46: #{tpu_custom_call.1} parent=5 // pred_check_branch
        %255 = sbr.rel (%p252) target = $region48
      $region47: #{tpu_custom_call.1} parent=5 // pred_region
        %s256 = ssub.s32 %s18, 1
        %s257 = smul.u32 16, %s23
        %s258 = ssub.s32 25, %s257
        %p259 = scmp.lt.s32.totalorder %s258, 16
        %s260 = scalar_select %p259, %s258, 16
        %s261 = smul.u32 128, %s260
        %p262 = scmp.lt.s32.totalorder %s257, 24
        %s263 = scalar_select %p262, %s257, 24
        %s264 = smul.addr %s263, 8
        %s265 = scalar_lea.vmem %s0, %s264
        %p266 = pneg %p44
        %p267 = pneg %p41
        %p268 = pneg %p65
        %p269 = pneg %p62
        %p270 = pneg %p86
        %p271 = pneg %p83
        %p272 = pneg %p107
        %p273 = pneg %p104
        %p274 = pneg %p128
        %p275 = pneg %p125
        %p276 = pneg %p149
        %p277 = pneg %p146
        %p278 = pneg %p170
        %p279 = pneg %p167
        %p280 = pneg %p196
        %p281 = pneg %p193
        %s282 = sand.u32 %s183, 1
        %s283 = scalar_lea.sflag [#allocation4], %s282
        %s284 = sand.u32 %s183, 1
        %s285 = scalar_lea.vmem [#allocation3], %s284
        %s286 = smul.u32 16, %s23
        %s287 = ssub.s32 25, %s286
        %p288 = scmp.lt.s32.totalorder %s287, 16
        %s289 = scalar_select %p288, %s287, 16
        %s290 = smul.u32 128, %s289
        %p291 = scmp.lt.s32.totalorder %s286, 24
        %s292 = scalar_select %p291, %s286, 24
        %s293 = smul.addr %s292, 8
        %s294 = scalar_lea.vmem %s0, %s293
        %s295 = smul.u32 16, %s23
        %s296 = ssub.s32 25, %s295
        %p297 = scmp.lt.s32.totalorder %s296, 16
        %s298 = scalar_select %p297, %s296, 16
        %s299 = smul.u32 128, %s298
        %v300 = vld [vmem:[%s1] sm:$0xff]
        %v301 = vld [vmem:[%s1 + $0x8] sm:$0xff]
        %v302 = vld [vmem:[%s1 + $0x10] sm:$0xff]
        %v303 = vld [vmem:[%s1 + $0x18] sm:$0xff]
        %v304 = vld [vmem:[%s294] sm:$0xff]
        %v305 = vld [vmem:[%s294 + $0x8] sm:$0xff]
        %v306 = vld [vmem:[%s294 + $0x10] sm:$0xff]
        %v307 = vld [vmem:[%s294 + $0x18] sm:$0xff]
        %v308 = vld [vmem:[%s294 + $0x20] sm:$0xff]
        %v309 = vld [vmem:[%s294 + $0x28] sm:$0xff]
        %v310 = vld [vmem:[%s294 + $0x30] sm:$0xff]
        %v311 = vld [vmem:[%s294 + $0x38] sm:$0xff]
        %v312 = vld [vmem:[%s294 + $0x40] sm:$0xff]
        %v313 = vld [vmem:[%s294 + $0x48] sm:$0xff]
        %v314 = vld [vmem:[%s294 + $0x50] sm:$0xff]
        %v315 = vld [vmem:[%s294 + $0x58] sm:$0xff]
        %v316 = vld [vmem:[%s294 + $0x60] sm:$0xff]
        %v317 = vld [vmem:[%s294 + $0x68] sm:$0xff]
        %v318 = vld [vmem:[%s294 + $0x70] sm:$0xff]
        %v319 = vld [vmem:[%s294 + $0x78] sm:$0xff]
        %v320 = vld [vmem:[%s2] sm:$0xff]
        %v321 = vld [vmem:[%s2 + $0x8] sm:$0xff]
        %v322 = vld [vmem:[%s2 + $0x10] sm:$0xff]
        %v323 = vld [vmem:[%s2 + $0x18] sm:$0xff]
        %325 = vset.pattern.permute.xlu0 0
        %326 = vperm.xlu0 %325, %v320
        %v327 = vpop.permute.xlu0 %326
        %330 = vset.pattern.permute.xlu0 0
        %331 = vperm.xlu0 %330, %v321
        %v332 = vpop.permute.xlu0 %331
        %335 = vset.pattern.permute.xlu0 0
        %336 = vperm.xlu0 %335, %v322
        %v337 = vpop.permute.xlu0 %336
        %340 = vset.pattern.permute.xlu0 0
        %341 = vperm.xlu0 %340, %v323
        %v342 = vpop.permute.xlu0 %341
        %vm344 = vcmask 130048
        %v346 = vsel %vm344, %v300, 0
        %v349 = vsel %vm344, %v301, 0
        %v352 = vsel %vm344, %v302, 0
        %v355 = vsel %vm344, %v303, 0
        %v358 = vsel %vm344, %v304, 0
        %v361 = vsel %vm344, %v305, 0
        %v364 = vsel %vm344, %v306, 0
        %v367 = vsel %vm344, %v307, 0
        %v370 = vsel %vm344, %v308, 0
        %v373 = vsel %vm344, %v309, 0
        %v376 = vsel %vm344, %v310, 0
        %v379 = vsel %vm344, %v311, 0
        %v382 = vsel %vm344, %v312, 0
        %v385 = vsel %vm344, %v313, 0
        %v388 = vsel %vm344, %v314, 0
        %v391 = vsel %vm344, %v315, 0
        %v394 = vsel %vm344, %v316, 0
        %v397 = vsel %vm344, %v317, 0
        %v400 = vsel %vm344, %v318, 0
        %v403 = vsel %vm344, %v319, 0
        %405 = vmatprep.subr.mxu0 0.0
        %406 = vmatpush1.xpose.msra.mxu0 %v358
        %407 = vmatprep.subr.mxu0 0.0
        %408 = vmatpush1.xpose.msra.mxu0 %v361
        %409 = vmatprep.subr.mxu0 0.0
        %410 = vmatpush1.xpose.msra.mxu0 %v364
        %411 = vmatprep.subr.mxu0 0.0
        %412 = vmatpush1.xpose.msra.mxu0 %v367
        %413 = vmatprep.subr.mxu0 0.0
        %414 = vmatpush1.xpose.msra.mxu0 %v370
        %415 = vmatprep.subr.mxu0 0.0
        %416 = vmatpush1.xpose.msra.mxu0 %v373
        %417 = vmatprep.subr.mxu0 0.0
        %418 = vmatpush1.xpose.msra.mxu0 %v376
        %419 = vmatprep.subr.mxu0 0.0
        %420 = vmatpush1.xpose.msra.mxu0 %v379
        %421 = vmatprep.subr.mxu0 0.0
        %422 = vmatpush1.xpose.msra.mxu0 %v382
        %423 = vmatprep.subr.mxu0 0.0
        %424 = vmatpush1.xpose.msra.mxu0 %v385
        %425 = vmatprep.subr.mxu0 0.0
        %426 = vmatpush1.xpose.msra.mxu0 %v388
        %427 = vmatprep.subr.mxu0 0.0
        %428 = vmatpush1.xpose.msra.mxu0 %v391
        %429 = vmatprep.subr.mxu0 0.0
        %430 = vmatpush1.xpose.msra.mxu0 %v394
        %431 = vmatprep.subr.mxu0 0.0
        %432 = vmatpush1.xpose.msra.mxu0 %v397
        %433 = vmatprep.subr.mxu0 0.0
        %434 = vmatpush1.xpose.msra.mxu0 %v400
        %435 = vmatprep.subr.mxu0 0.0
        %436 = vmatpush1.xpose.msra.mxu0 %v403
        %437 = vmatprep.subr.mxu0 0.0
        %438 = vmatpush1.xpose.msra.mxu0 0.0
        %439 = vmatprep.subr.mxu0 0.0
        %440 = vmatpush1.xpose.msra.mxu0 0.0
        %441 = vmatprep.subr.mxu0 0.0
        %442 = vmatpush1.xpose.msra.mxu0 0.0
        %443 = vmatprep.subr.mxu0 0.0
        %444 = vmatpush1.xpose.msra.mxu0 0.0
        %445 = vmatprep.subr.mxu0 0.0
        %446 = vmatpush1.xpose.msra.mxu0 0.0
        %447 = vmatprep.subr.mxu0 0.0
        %448 = vmatpush1.xpose.msra.mxu0 0.0
        %449 = vmatprep.subr.mxu0 0.0
        %450 = vmatpush1.xpose.msra.mxu0 0.0
        %451 = vmatprep.subr.mxu0 0.0
        %452 = vmatpush1.xpose.msra.mxu0 0.0
        %453 = vmatprep.subr.mxu0 0.0
        %454 = vmatpush1.xpose.msra.mxu0 0.0
        %455 = vmatprep.subr.mxu0 0.0
        %456 = vmatpush1.xpose.msra.mxu0 0.0
        %457 = vmatprep.subr.mxu0 0.0
        %458 = vmatpush1.xpose.msra.mxu0 0.0
        %459 = vmatprep.subr.mxu0 0.0
        %460 = vmatpush1.xpose.msra.mxu0 0.0
        %461 = vmatprep.subr.mxu0 0.0
        %462 = vmatpush1.xpose.msra.mxu0 0.0
        %463 = vmatprep.subr.mxu0 0.0
        %464 = vmatpush1.xpose.msra.mxu0 0.0
        %465 = vmatprep.subr.mxu0 0.0
        %466 = vmatpush1.xpose.msra.mxu0 0.0
        %467 = vmatprep.subr.mxu0 0.0
        %468 = vmatpush1.xpose.msra.mxu0 0.0
        %469 = vmatprep.mubr.f32.mxu0 0.0
        %470 = vmatmul.mubr.f32.gmra.mrb[0].mxu0 %v346
        %v471 = vpop.f32.mrb[0].mxu0
        %v472 = vadd.f32 %v327, %v471
        %v473 = vpop.f32.mrb[0].mxu0
        %474 = vmatprep.mubr.f32.mxu0 0.0
        %475 = vmatmul.mubr.f32.gmra.mrb[0].mxu0 %v349
        %v476 = vpop.f32.mrb[0].mxu0
        %v477 = vadd.f32 %v332, %v476
        %v478 = vpop.f32.mrb[0].mxu0
        %479 = vmatprep.mubr.f32.mxu0 0.0
        %480 = vmatmul.mubr.f32.gmra.mrb[0].mxu0 %v352
        %v481 = vpop.f32.mrb[0].mxu0
        %v482 = vadd.f32 %v337, %v481
        %v483 = vpop.f32.mrb[0].mxu0
        %484 = vmatprep.mubr.f32.mxu0 0.0
        %485 = vmatmul.mubr.f32.gmra.mrb[0].mxu0 %v355
        %v486 = vpop.f32.mrb[0].mxu0
        %v487 = vadd.f32 %v342, %v486
        %v488 = vpop.f32.mrb[0].mxu0
        %489 = vdwg.mxu0
        %v490 = vmax.f32 %v472, 0.0
        %v491 = vmax.f32 %v477, 0.0
        %v492 = vmax.f32 %v482, 0.0
        %v493 = vmax.f32 %v487, 0.0
        %v494 = vld [vmem:[%s3] sm:$0xff]
        %v495 = vld [vmem:[%s3 + $0x8] sm:$0xff]
        %v496 = vld [vmem:[%s3 + $0x10] sm:$0xff]
        %v497 = vld [vmem:[%s3 + $0x18] sm:$0xff]
        %v498 = vld [vmem:[%s4] sm:$0xff]
        %v499 = vld [vmem:[%s4 + $0x8] sm:$0xff]
        %v500 = vld [vmem:[%s4 + $0x10] sm:$0xff]
        %v501 = vld [vmem:[%s4 + $0x18] sm:$0xff]
        %503 = vset.pattern.permute.xlu0 0
        %504 = vperm.xlu0 %503, %v498
        %v505 = vpop.permute.xlu0 %504
        %508 = vset.pattern.permute.xlu0 0
        %509 = vperm.xlu0 %508, %v499
        %v510 = vpop.permute.xlu0 %509
        %513 = vset.pattern.permute.xlu0 0
        %514 = vperm.xlu0 %513, %v500
        %v515 = vpop.permute.xlu0 %514
        %518 = vset.pattern.permute.xlu0 0
        %519 = vperm.xlu0 %518, %v501
        %v520 = vpop.permute.xlu0 %519
        %vm522 = vcmask 261120
        %v524 = vsel %vm522, %v494, 0
        %v527 = vsel %vm522, %v495, 0
        %v530 = vsel %vm522, %v496, 0
        %v533 = vsel %vm522, %v497, 0
        %535 = vmatprep.subr.mxu0 0.0
        %536 = vmatpush1.msra.mxu0 %v490
        %537 = vmatprep.subr.mxu0 0.0
        %538 = vmatpush1.msra.mxu0 %v491
        %539 = vmatprep.subr.mxu0 0.0
        %540 = vmatpush1.msra.mxu0 %v492
        %541 = vmatprep.subr.mxu0 0.0
        %542 = vmatpush1.msra.mxu0 %v493
        %543 = vmatprep.subr.mxu0 0.0
        %544 = vmatpush1.msra.mxu0 0.0
        %545 = vmatprep.subr.mxu0 0.0
        %546 = vmatpush1.msra.mxu0 0.0
        %547 = vmatprep.subr.mxu0 0.0
        %548 = vmatpush1.msra.mxu0 0.0
        %549 = vmatprep.subr.mxu0 0.0
        %550 = vmatpush1.msra.mxu0 0.0
        %551 = vmatprep.subr.mxu0 0.0
        %552 = vmatpush1.msra.mxu0 0.0
        %553 = vmatprep.subr.mxu0 0.0
        %554 = vmatpush1.msra.mxu0 0.0
        %555 = vmatprep.subr.mxu0 0.0
        %556 = vmatpush1.msra.mxu0 0.0
        %557 = vmatprep.subr.mxu0 0.0
        %558 = vmatpush1.msra.mxu0 0.0
        %559 = vmatprep.subr.mxu0 0.0
        %560 = vmatpush1.msra.mxu0 0.0
        %561 = vmatprep.subr.mxu0 0.0
        %562 = vmatpush1.msra.mxu0 0.0
        %563 = vmatprep.subr.mxu0 0.0
        %564 = vmatpush1.msra.mxu0 0.0
        %565 = vmatprep.subr.mxu0 0.0
        %566 = vmatpush1.msra.mxu0 0.0
        %567 = vmatprep.subr.mxu0 0.0
        %568 = vmatpush1.msra.mxu0 0.0
        %569 = vmatprep.subr.mxu0 0.0
        %570 = vmatpush1.msra.mxu0 0.0
        %571 = vmatprep.subr.mxu0 0.0
        %572 = vmatpush1.msra.mxu0 0.0
        %573 = vmatprep.subr.mxu0 0.0
        %574 = vmatpush1.msra.mxu0 0.0
        %575 = vmatprep.subr.mxu0 0.0
        %576 = vmatpush1.msra.mxu0 0.0
        %577 = vmatprep.subr.mxu0 0.0
        %578 = vmatpush1.msra.mxu0 0.0
        %579 = vmatprep.subr.mxu0 0.0
        %580 = vmatpush1.msra.mxu0 0.0
        %581 = vmatprep.subr.mxu0 0.0
        %582 = vmatpush1.msra.mxu0 0.0
        %583 = vmatprep.subr.mxu0 0.0
        %584 = vmatpush1.msra.mxu0 0.0
        %585 = vmatprep.subr.mxu0 0.0
        %586 = vmatpush1.msra.mxu0 0.0
        %587 = vmatprep.subr.mxu0 0.0
        %588 = vmatpush1.msra.mxu0 0.0
        %589 = vmatprep.subr.mxu0 0.0
        %590 = vmatpush1.msra.mxu0 0.0
        %591 = vmatprep.subr.mxu0 0.0
        %592 = vmatpush1.msra.mxu0 0.0
        %593 = vmatprep.subr.mxu0 0.0
        %594 = vmatpush1.msra.mxu0 0.0
        %595 = vmatprep.subr.mxu0 0.0
        %596 = vmatpush1.msra.mxu0 0.0
        %597 = vmatprep.subr.mxu0 0.0
        %598 = vmatpush1.msra.mxu0 0.0
        %599 = vmatprep.mubr.f32.mxu0 0.0
        %600 = vmatmul.mubr.f32.gmra.mrb[0].mxu0 %v524
        %v601 = vpop.f32.mrb[0].mxu0
        %v602 = vadd.f32 %v505, %v601
        %v603 = vpop.f32.mrb[0].mxu0
        %604 = vmatprep.mubr.f32.mxu0 0.0
        %605 = vmatmul.mubr.f32.gmra.mrb[0].mxu0 %v527
        %v606 = vpop.f32.mrb[0].mxu0
        %v607 = vadd.f32 %v510, %v606
        %v608 = vpop.f32.mrb[0].mxu0
        %609 = vmatprep.mubr.f32.mxu0 0.0
        %610 = vmatmul.mubr.f32.gmra.mrb[0].mxu0 %v530
        %v611 = vpop.f32.mrb[0].mxu0
        %v612 = vadd.f32 %v515, %v611
        %v613 = vpop.f32.mrb[0].mxu0
        %614 = vmatprep.mubr.f32.mxu0 0.0
        %615 = vmatmul.mubr.f32.gmra.mrb[0].mxu0 %v533
        %v616 = vpop.f32.mrb[0].mxu0
        %v617 = vadd.f32 %v520, %v616
        %v618 = vpop.f32.mrb[0].mxu0
        %619 = vdwg.mxu0
        %v620 = vmax.f32 %v602, 0.0
        %v621 = vmax.f32 %v607, 0.0
        %v622 = vmax.f32 %v612, 0.0
        %v623 = vmax.f32 %v617, 0.0
        %v624 = vld [vmem:[%s5] sm:$0xff]
        %v625 = vld [vmem:[%s5 + $0x8] sm:$0xff]
        %v626 = vld [vmem:[%s5 + $0x10] sm:$0xff]
        %v627 = vld [vmem:[%s5 + $0x18] sm:$0xff]
        %629 = vset.pattern.permute.xlu0 0
        %630 = vperm.xlu0 %629, %v624
        %v631 = vpop.permute.xlu0 %630
        %634 = vset.pattern.permute.xlu0 0
        %635 = vperm.xlu0 %634, %v625
        %v636 = vpop.permute.xlu0 %635
        %639 = vset.pattern.permute.xlu0 0
        %640 = vperm.xlu0 %639, %v626
        %v641 = vpop.permute.xlu0 %640
        %644 = vset.pattern.permute.xlu0 0
        %645 = vperm.xlu0 %644, %v627
        %v646 = vpop.permute.xlu0 %645
        %v648 = vmul.f32 %v620, %v631
        %v649 = vmul.f32 %v621, %v636
        %v650 = vmul.f32 %v622, %v641
        %v651 = vmul.f32 %v623, %v646
        %v652 = vadd.f32 %v648, %v649
        %v653 = vadd.f32 %v652, %v650
        %v654 = vadd.f32 %v653, %v651
        %v655 = vrot.slane %v654, 4
        %v656 = vadd.f32 %v654, %v655
        %v657 = vrot.slane %v656, 2
        %v658 = vadd.f32 %v656, %v657
        %v659 = vrot.slane %v658, 1
        %v660 = vadd.f32 %v658, %v659
        %v661 = vld [vmem:[#allocation2] sm:$0x1]
        %663 = vset.pattern.permute.xlu0 0
        %664 = vperm.xlu0 %663, %v661
        %v665 = vpop.permute.xlu0 %664
        %v667 = vlaneseq
        %v668 = vshrl.u32 %v667, 7
        %v669 = vsub.s32 0, %v668
        %v670 = vrot.slane %v665, %v669
        %v671 = vadd.f32 %v660, %v670
        %v672 = vmax.f32 %v671, 0.0
        %v673 = vand.u32 2147483647, %v671
        %v674 = vsub.f32 0.0, %v673
        %v675 = vmul.f32 %v674, 1.442695
        %v676 = vpow.pop %v675
        %v677 = vadd.f32 %v676, 1.0
        %v678 = vlog2.pop %v677
        %v679 = vmul.f32 %v678, 0.6931472
        %v680 = vmul.f32 -0.5, %v676
        %v681 = vadd.f32 %v680, 1.0
        %v682 = vmul.f32 %v681, %v676
        %v683 = vand.u32 2147483647, %v676
        %vm684 = vcmp.lt.f32.partialorder %v683, 0.0004427343
        %v685 = vsel %vm684, %v682, %v679
        %v686 = vadd.f32 %v672, %v685
        %v687 = vmin.f32 %v686, 10000.0
        %688 = vst [vmem:[%s285] sm:$0x1] %v687
        %s689 = sand.u32 %s183, 1
        %s690 = scalar_lea.sflag [#allocation4], %s689
        %s691 = sand.u32 %s183, 1
        %s692 = scalar_lea.vmem [#allocation3], %s691
        // Predicated region
        $region49: #{tpu_custom_call.1} parent=47 // pred_check
          %p693 = pneg %p193
        $region50: #{tpu_custom_call.1} parent=47 // pred_check_branch
          %695 = sbr.rel (%p693) target = $region52
        $region51: #{tpu_custom_call.1} parent=47 // pred_region
          %s697 = ssub.s32 16, 16
          %698 = vsyncadd %s690, %s697
          %s699 = smul.addr %s23, 16
          %s700 = scalar_lea.hbm %s7, %s699
          %s702 = sshll.u32 %s692, 4
          %s703 = int_to_ptr.vmem [resolvable:$true] %s702
          %705 = dma.vmem_to_hbm [thread:$0]  %s703, 16, %s700, %s690
        $region52: #{tpu_custom_call.1} parent=47 // pred_fallthru
          _
      $region48: #{tpu_custom_call.1} parent=5 // pred_fallthru
        _
      %p706 = scmp.le.s32.totalorder 2, %s18
      // Predicated region
      $region53: #{tpu_custom_call.1} parent=5 // pred_check
        %p707 = pneg %p706
      $region54: #{tpu_custom_call.1} parent=5 // pred_check_branch
        %709 = sbr.rel (%p707) target = $region56
      $region55: #{tpu_custom_call.1} parent=5 // pred_region
        %s710 = ssub.s32 %s18, 2
        // Predicated region
        $region57: #{tpu_custom_call.1} parent=55 // pred_check
          %p711 = pneg %p199
        $region58: #{tpu_custom_call.1} parent=55 // pred_check_branch
          %713 = sbr.rel (%p711) target = $region60
        $region59: #{tpu_custom_call.1} parent=55 // pred_region
          %s714 = sand.u32 %s184, 1
          %s715 = scalar_lea.sflag [#allocation4], %s714
          %s716 = sand.u32 %s184, 1
          %s717 = scalar_lea.vmem [#allocation3], %s716
          %718 = dma.done %s715, 16
        $region60: #{tpu_custom_call.1} parent=55 // pred_fallthru
          _
      $region56: #{tpu_custom_call.1} parent=5 // pred_fallthru
        _
    $region6: #{tpu_custom_call.1} parent=1 // loop_footer
      %s22 = sadd.s32 1, %s18
    $region7: #{tpu_custom_call.1} parent=1 // loop_footer_branch
      %17 = sbr.rel target = $region3
    $region8: #{tpu_custom_call.1} parent=1 // loop_exit
      _
    %719 = vsyncpa [#allocation4], 1
    %s720 = scalar_lea.sflag [#allocation4], 1
    %721 = vsyncpa %s720, 1

</llo_original>
